<compile_context>
chip_gen: v7x
topology: tpu7x:2x2x1
jax: 0.10.0
libtpu: 0.0.40
codegen_flags: <defaults>
</compile_context>

<pallas_src>
import functools
import math

import jax
import jax.numpy as jnp
from jax.experimental import pallas as pl
from jax.experimental.pallas import tpu as pltpu


# ----------------------------------------------------------------------------
# Buffer construction (deterministic, matches nn.Module.__init__)
# ----------------------------------------------------------------------------
def make_positional_encoding(d_model: int, max_len: int = 5000) -> jnp.ndarray:
    """Builds the `pe` buffer exactly as the PyTorch __init__ does.

    Returns pe with shape (max_len, 1, d_model) in float32.
    """
    position = jnp.arange(0, max_len, dtype=jnp.float32)[:, None]            # (max_len, 1)
    div_term = jnp.exp(
        jnp.arange(0, d_model, 2, dtype=jnp.float32) * (-math.log(10000.0) / d_model)
    )                                                                         # (d_model/2,)
    angles = position * div_term                                              # (max_len, d_model/2)
    pe = jnp.zeros((max_len, d_model), dtype=jnp.float32)
    pe = pe.at[:, 0::2].set(jnp.sin(angles))
    pe = pe.at[:, 1::2].set(jnp.cos(angles))
    # pe.unsqueeze(0).transpose(0, 1) -> (max_len, 1, d_model)
    return pe[:, None, :]


# ----------------------------------------------------------------------------
# Pallas kernel: lane-dense elementwise add, pe broadcast via static slice adds
# ----------------------------------------------------------------------------
def _pe_add_kernel(x_ref, pe_ref, o_ref, *, n_batch, d_model):
    # x_ref / o_ref : (tS, n_batch * d_model) flattened tile of the input/output
    # pe_ref        : (tS, d_model)           tile of the positional encoding
    pe = pe_ref[...]
    # Static per-batch slices: no (tS, B*D) broadcast temp is ever materialized;
    # each slice is a 128-lane-aligned sub-block when d_model % 128 == 0.
    for b in range(n_batch):
        sl = pl.ds(b * d_model, d_model)
        o_ref[:, sl] = (x_ref[:, sl] + pe).astype(o_ref.dtype)


def _round_up(a: int, m: int) -> int:
    return -(-a // m) * m


def _pick_blocks(S: int, B: int, D: int, itemsize: int, target_bytes: int):
    """Pick (rows per step, batches per step).

    Rows are a multiple of the dtype-appropriate sublane count (8 f32 / 16 bf16 /
    32 int8) unless the block spans the full S extent.  The batch (lane) axis is
    only split when a minimal-height full-width block would already blow the
    target byte budget AND D is 128-aligned (so lane blocks stay legal).
    """
    sub = max(8, 32 // max(itemsize, 1))          # f32:8, bf16:16, int8/fp8:32
    row_bytes = B * D * itemsize

    # Lane (batch) blocking only for very wide rows.
    if B > 1 and D % 128 == 0 and row_bytes * sub > target_bytes:
        bpg = max(1, target_bytes // (sub * D * itemsize))
        bpg = int(min(bpg, B))
    else:
        bpg = B

    blk_row_bytes = bpg * D * itemsize
    if S <= sub:
        tS = S                                     # full-extent block (always legal)
    else:
        tS = max(sub, (target_bytes // max(blk_row_bytes, 1)) // sub * sub)
        if tS >= S:
            tS = S                                 # whole extent fits in one block
        # else: tS is a multiple of `sub`; Pallas pads the partial last block.
    return int(tS), int(bpg)


def positional_encoding_forward(x: jnp.ndarray, pe: jnp.ndarray,
                                *, target_block_bytes: int = 4 << 20,
                                min_pallas_bytes: int = 256 << 10) -> jnp.ndarray:
    """x: (S, B, D); pe: (max_len, 1, D) float32. Returns (S, B, D) in x.dtype."""
    S, B, D = x.shape
    itemsize = x.dtype.itemsize
    total_bytes = S * B * D * itemsize

    # Tiny inputs: a standalone Pallas call can't beat a fused XLA add.
    if total_bytes < min_pallas_bytes:
        return (x + pe[:S]).astype(x.dtype)

    # Lane-dense 2-D views: (S, B*D) for x/out, (S, D) for pe (no size-1 dim).
    x2 = x.reshape(S, B * D)
    pe2 = pe[:S, 0, :]                             # same slicing as self.pe[:x.size(0), :]

    tS, bpg = _pick_blocks(S, B, D, itemsize, target_block_bytes)
    tBD = bpg * D
    grid = (pl.cdiv(S, tS), pl.cdiv(B, bpg))

    # VMEM budget: double-buffered x tile + out tile + pe tile (no broadcast temp).
    x_tile = tS * tBD * itemsize
    pe_tile = tS * D * pe2.dtype.itemsize
    budget = 2 * (2 * x_tile + pe_tile)
    vmem_limit = int(min(48 << 20, max(32 << 20, budget + (8 << 20))))

    out2 = pl.pallas_call(
        functools.partial(_pe_add_kernel, n_batch=bpg, d_model=D),
        out_shape=jax.ShapeDtypeStruct((S, B * D), x.dtype),
        grid_spec=pltpu.PrefetchScalarGridSpec(
            num_scalar_prefetch=0,
            grid=grid,
            in_specs=[
                pl.BlockSpec((tS, tBD), lambda i, j: (i, j)),
                pl.BlockSpec((tS, D), lambda i, j: (i, 0)),
            ],
            out_specs=pl.BlockSpec((tS, tBD), lambda i, j: (i, j)),
        ),
        compiler_params=pltpu.CompilerParams(
            dimension_semantics=("parallel", "parallel"),
            vmem_limit_bytes=vmem_limit,
        ),
        # Write the result back into x's HBM slab (identical in/out index maps,
        # read-then-write per tile): halves peak HBM footprint at no cost.
        input_output_aliases={0: 0},
    )(x2, pe2)

    # Dropout in eval mode is the identity.
    return out2.reshape(S, B, D)


# ----------------------------------------------------------------------------
# Main
# ----------------------------------------------------------------------------
if __name__ == "__main__":
    # Small but lane-dense shapes: seq=64, batch=2, d_model=128.
    S, B, D = 64, 2, 128
    MAX_LEN = 512

    key = jax.random.PRNGKey(0)
    x = jax.random.normal(key, (S, B, D), dtype=jnp.float32)

    pe = make_positional_encoding(D, max_len=MAX_LEN)

    # min_pallas_bytes=0 so the Pallas kernel (not the tiny-input fallback) runs.
    out = jax.block_until_ready(
        positional_encoding_forward(x, pe, min_pallas_bytes=0)
    )

    # Reference check in plain JAX (eval-mode dropout == identity).
    ref = x + pe[:S]
    assert out.shape == (S, B, D)
    assert jnp.allclose(out, ref, atol=1e-6), "mismatch vs. reference"

    print("KERNEL_OK")
</pallas_src>

<mosaic_0001>
module attributes {stable_mosaic.version = 11 : i64} {
  func.func @_pe_add_kernel(%arg0: i32, %arg1: i32, %arg2: memref<64x256xf32, #tpu.memory_space<vmem>>, %arg3: memref<64x128xf32, #tpu.memory_space<vmem>>, %arg4: memref<64x256xf32, #tpu.memory_space<vmem>>) attributes {dimension_semantics = [#tpu.dimension_semantics<parallel>, #tpu.dimension_semantics<parallel>], iteration_bounds = array<i64: 1, 1>, scalar_prefetch = 0 : i64, scratch_operands = 0 : i64, tpu.core_type = #tpu.core_type<tc>, window_params = [{transform_indices = @transform_0, window_bounds = array<i64: 64, 256>}, {transform_indices = @transform_1, window_bounds = array<i64: 64, 128>}, {transform_indices = @transform_2, window_bounds = array<i64: 64, 256>}]} {
    %c0 = arith.constant 0 : index
    %c0_0 = arith.constant 0 : index
    %0 = vector.load %arg3[%c0, %c0_0] : memref<64x128xf32, #tpu.memory_space<vmem>>, vector<64x128xf32>
    %c0_1 = arith.constant 0 : index
    %c0_2 = arith.constant 0 : index
    %1 = vector.load %arg2[%c0_1, %c0_2] : memref<64x256xf32, #tpu.memory_space<vmem>>, vector<64x128xf32>
    %2 = arith.addf %1, %0 : vector<64x128xf32>
    %c0_3 = arith.constant 0 : index
    %c0_4 = arith.constant 0 : index
    %3 = vector.load %arg4[%c0_3, %c0_4] : memref<64x256xf32, #tpu.memory_space<vmem>>, vector<64x128xf32>
    tpu.vector_store %arg4[%c0_3, %c0_4], %2 {strides = array<i32>} : memref<64x256xf32, #tpu.memory_space<vmem>>, vector<64x128xf32>,
    %c0_5 = arith.constant 0 : index
    %c128 = arith.constant 128 : index
    %4 = vector.load %arg2[%c0_5, %c128] : memref<64x256xf32, #tpu.memory_space<vmem>>, vector<64x128xf32>
    %5 = arith.addf %4, %0 : vector<64x128xf32>
    %c0_6 = arith.constant 0 : index
    %c128_7 = arith.constant 128 : index
    %6 = vector.load %arg4[%c0_6, %c128_7] : memref<64x256xf32, #tpu.memory_space<vmem>>, vector<64x128xf32>
    tpu.vector_store %arg4[%c0_6, %c128_7], %5 {strides = array<i32>} : memref<64x256xf32, #tpu.memory_space<vmem>>, vector<64x128xf32>,
    return
  }
  func.func @transform_0(%arg0: i32, %arg1: i32) -> (i32, i32) {
    %c0_i32 = arith.constant 0 : i32
    return %arg0, %arg1 : i32, i32
  }
  func.func @transform_1(%arg0: i32, %arg1: i32) -> (i32, i32) {
    %c0_i32 = arith.constant 0 : i32
    %c0_i32_0 = arith.constant 0 : i32
    return %arg0, %c0_i32 : i32, i32
  }
  func.func @transform_2(%arg0: i32, %arg1: i32) -> (i32, i32) {
    %c0_i32 = arith.constant 0 : i32
    return %arg0, %arg1 : i32, i32
  }
}

</mosaic_0001>

<llo_original>
// kernel: tpu_custom_call.1
$region0: #{tpu_custom_call.1}
  #allocation0 [shape = 'u32[]', space=smem, size = 0x4, offset = 0x4, fixed_abs, tag = 'smem constant byte address 0x4 - core index']
  #allocation1 [shape = 'u32[144,128]{1,0:T(1,128)}', space=vmem, size = 0x12000, scoped, tag = 'internal scratch']
  %s0 = inlined_call_operand.hbm [shape: f32[64,256], index: 0, kind: input, shape index: {}, may-alias: {0,2}]
  %s1 = inlined_call_operand.vmem [shape: f32[64,128], index: 1, kind: input, shape index: {}]
  %s2 = inlined_call_operand.hbm [shape: f32[64,256], index: 2, kind: output, shape index: {}, may-alias: {0,2}]
  %s3 = sld [smem:[#allocation0]]
  $region22: #{tpu_custom_call.1} parent=0
    _
  %s5 = ssub.s32 1, %s3
  %s6 = scalar_select 0, %s5, %s3
  $region1: #{tpu_custom_call.1} parent=0
    #allocation2 [shape = 'u8[65536]{0}', space=vmem, size = 0x10000, scoped, tag = 'input window, operand 0, single buffered']
    #allocation3 [shape = 's32[1]{0}', space=sflag, size = 0x4, scoped, tag = 'scoped memory for tpu_custom_call.1']
    #allocation4 [shape = 's32[1]{0}', space=sflag, size = 0x4, scoped, tag = 'scoped memory for tpu_custom_call.1']
    #allocation5 [shape = 'u8[65536]{0}', space=vmem, size = 0x10000, scoped, tag = 'output window, operand 0, single buffered']
    %7 = vsyncpa [#allocation3], 0
    %8 = vsyncpa [#allocation4], 0
    // Predicated region
    $region2: #{tpu_custom_call.1} parent=1 // pred_check
      _
    $region3: #{tpu_custom_call.1} parent=1 // pred_check_branch
      %10 = sbr.rel (0) target = $region5
    $region4: #{tpu_custom_call.1} parent=1 // pred_region
      %s12 = ssub.s32 2048, 2048
      %13 = vsyncadd [#allocation3], %s12
      %s14 = sshll.u32 [#allocation2], 4
      %s15 = int_to_ptr.vmem [resolvable:$true] %s14
      %20 = dma.hbm_to_vmem [thread:$0]  %s0, 2048, %s15, [#allocation3], 256, 256, 16
    $region5: #{tpu_custom_call.1} parent=1 // pred_fallthru
      _
    // Predicated region
    $region6: #{tpu_custom_call.1} parent=1 // pred_check
      _
    $region7: #{tpu_custom_call.1} parent=1 // pred_check_branch
      %22 = sbr.rel (0) target = $region9
    $region8: #{tpu_custom_call.1} parent=1 // pred_region
      _
    $region9: #{tpu_custom_call.1} parent=1 // pred_fallthru
      _
    // Predicated region
    $region10: #{tpu_custom_call.1} parent=1 // pred_check
      _
    $region11: #{tpu_custom_call.1} parent=1 // pred_check_branch
      %24 = sbr.rel (0) target = $region13
    $region12: #{tpu_custom_call.1} parent=1 // pred_region
      %25 = dma.done [#allocation3], 2048
    $region13: #{tpu_custom_call.1} parent=1 // pred_fallthru
      _
    %v26 = vld [vmem:[%s1] sm:$0xff]
    %v27 = vld [vmem:[%s1 + $0x8] sm:$0xff]
    %v28 = vld [vmem:[%s1 + $0x10] sm:$0xff]
    %v29 = vld [vmem:[%s1 + $0x18] sm:$0xff]
    %v30 = vld [vmem:[%s1 + $0x20] sm:$0xff]
    %v31 = vld [vmem:[%s1 + $0x28] sm:$0xff]
    %v32 = vld [vmem:[%s1 + $0x30] sm:$0xff]
    %v33 = vld [vmem:[%s1 + $0x38] sm:$0xff]
    %v34 = vld [vmem:[#allocation2] sm:$0xff]
    %v35 = vld [vmem:[#allocation2 + $0x10] sm:$0xff]
    %v36 = vld [vmem:[#allocation2 + $0x20] sm:$0xff]
    %v37 = vld [vmem:[#allocation2 + $0x30] sm:$0xff]
    %v38 = vld [vmem:[#allocation2 + $0x40] sm:$0xff]
    %v39 = vld [vmem:[#allocation2 + $0x50] sm:$0xff]
    %v40 = vld [vmem:[#allocation2 + $0x60] sm:$0xff]
    %v41 = vld [vmem:[#allocation2 + $0x70] sm:$0xff]
    %v42 = vadd.f32 %v34, %v26
    %v43 = vadd.f32 %v35, %v27
    %v44 = vadd.f32 %v36, %v28
    %v45 = vadd.f32 %v37, %v29
    %v46 = vadd.f32 %v38, %v30
    %v47 = vadd.f32 %v39, %v31
    %v48 = vadd.f32 %v40, %v32
    %v49 = vadd.f32 %v41, %v33
    %50 = vst [vmem:[#allocation5] sm:$0xff] %v42
    %51 = vst [vmem:[#allocation5 + $0x10] sm:$0xff] %v43
    %52 = vst [vmem:[#allocation5 + $0x20] sm:$0xff] %v44
    %53 = vst [vmem:[#allocation5 + $0x30] sm:$0xff] %v45
    %54 = vst [vmem:[#allocation5 + $0x40] sm:$0xff] %v46
    %55 = vst [vmem:[#allocation5 + $0x50] sm:$0xff] %v47
    %56 = vst [vmem:[#allocation5 + $0x60] sm:$0xff] %v48
    %57 = vst [vmem:[#allocation5 + $0x70] sm:$0xff] %v49
    %v58 = vld [vmem:[#allocation2 + $0x8] sm:$0xff]
    %v59 = vld [vmem:[#allocation2 + $0x18] sm:$0xff]
    %v60 = vld [vmem:[#allocation2 + $0x28] sm:$0xff]
    %v61 = vld [vmem:[#allocation2 + $0x38] sm:$0xff]
    %v62 = vld [vmem:[#allocation2 + $0x48] sm:$0xff]
    %v63 = vld [vmem:[#allocation2 + $0x58] sm:$0xff]
    %v64 = vld [vmem:[#allocation2 + $0x68] sm:$0xff]
    %v65 = vld [vmem:[#allocation2 + $0x78] sm:$0xff]
    %v66 = vadd.f32 %v58, %v26
    %v67 = vadd.f32 %v59, %v27
    %v68 = vadd.f32 %v60, %v28
    %v69 = vadd.f32 %v61, %v29
    %v70 = vadd.f32 %v62, %v30
    %v71 = vadd.f32 %v63, %v31
    %v72 = vadd.f32 %v64, %v32
    %v73 = vadd.f32 %v65, %v33
    %74 = vst [vmem:[#allocation5 + $0x8] sm:$0xff] %v66
    %75 = vst [vmem:[#allocation5 + $0x18] sm:$0xff] %v67
    %76 = vst [vmem:[#allocation5 + $0x28] sm:$0xff] %v68
    %77 = vst [vmem:[#allocation5 + $0x38] sm:$0xff] %v69
    %78 = vst [vmem:[#allocation5 + $0x48] sm:$0xff] %v70
    %79 = vst [vmem:[#allocation5 + $0x58] sm:$0xff] %v71
    %80 = vst [vmem:[#allocation5 + $0x68] sm:$0xff] %v72
    %81 = vst [vmem:[#allocation5 + $0x78] sm:$0xff] %v73
    // Predicated region
    $region14: #{tpu_custom_call.1} parent=1 // pred_check
      _
    $region15: #{tpu_custom_call.1} parent=1 // pred_check_branch
      %83 = sbr.rel (0) target = $region17
    $region16: #{tpu_custom_call.1} parent=1 // pred_region
      %s85 = ssub.s32 2048, 2048
      %86 = vsyncadd [#allocation4], %s85
      %s87 = sshll.u32 [#allocation5], 4
      %s88 = int_to_ptr.vmem [resolvable:$true] %s87
      %93 = dma.vmem_to_hbm [thread:$0]  %s88, 2048, %s2, [#allocation4], 256, 256, 16
    $region17: #{tpu_custom_call.1} parent=1 // pred_fallthru
      _
    // Predicated region
    $region18: #{tpu_custom_call.1} parent=1 // pred_check
      _
    $region19: #{tpu_custom_call.1} parent=1 // pred_check_branch
      %95 = sbr.rel (0) target = $region21
    $region20: #{tpu_custom_call.1} parent=1 // pred_region
      %96 = dma.done [#allocation4], 2048
    $region21: #{tpu_custom_call.1} parent=1 // pred_fallthru
      _
    %97 = vsyncpa [#allocation3], 1
    %98 = vsyncpa [#allocation4], 1

</llo_original>
